<compile_context>
chip_gen: v7x
topology: tpu7x:2x2x1
jax: 0.10.0
libtpu: 0.0.40
codegen_flags: <defaults>
</compile_context>

<pallas_src>
import jax
import jax.numpy as jnp
from jax.experimental import pallas as pl
from jax.experimental.pallas import tpu as pltpu  # noqa: F401

EPS = 1e-5
HP = 128  # hidden dim padded to one full lane width


def mlp_kernel(x_ref, w1_ref, gamma_ref, beta_ref, w23_ref, o_ref):
    # ---- Linear 1 (no bias): [N, D_in] @ [D_in, HP] -> [N, HP]  (MXU) ----
    h = jnp.dot(x_ref[...], w1_ref[...], preferred_element_type=jnp.float32)

    # ---- BatchNorm1d (training mode: batch mean, biased variance) ----
    mean = jnp.mean(h, axis=0, keepdims=True)              # [1, HP]
    c = h - mean
    var = jnp.mean(c * c, axis=0, keepdims=True)           # [1, HP]
    scale = gamma_ref[...] * jax.lax.rsqrt(var + EPS)      # [1, HP]
    shift = beta_ref[...] - mean * scale                   # [1, HP]

    # ---- BN affine folded into one FMA, fused with ReLU ----
    h = jnp.maximum(h * scale + shift, 0.0)                # [N, HP]

    # ---- Linear2·Linear3 pre-folded into w23 [1, HP]: VPU mul + lane reduce ----
    logits = jnp.sum(h * w23_ref[...], axis=-1, keepdims=True)   # [N, 1]

    # ---- Sigmoid (exp goes to the EUP) ----
    sig = 1.0 / (1.0 + jnp.exp(-logits))

    # Lane-dense store: broadcast the per-row scalar across the 128-lane output
    # block so the write is an unmasked vst; the wrapper slices column 0.
    o_ref[...] = jnp.broadcast_to(sig, o_ref.shape)


def fold_params(w1, gamma, beta, w2, w3):
    """One-time parameter folding / lane padding (done once, outside the kernel)."""
    h = w1.shape[1]
    pad = HP - h
    w1_p = jnp.pad(w1, ((0, 0), (0, pad)))          # [D_in, HP], padded cols are zero
    gamma_p = jnp.pad(gamma, ((0, 0), (0, pad)))    # [1, HP]
    beta_p = jnp.pad(beta, ((0, 0), (0, pad)))      # [1, HP]
    w23 = (w2 @ w3).reshape(1, -1)                  # [1, H]   (w2 @ w3 fold)
    w23_p = jnp.pad(w23, ((0, 0), (0, pad)))        # [1, HP], padded tail is zero
    return w1_p, gamma_p, beta_p, w23_p


def mlp_forward(x, w1_p, gamma_p, beta_p, w23_p):
    """x: [N, D_in] float32 -> [N, 1] float32."""
    n = x.shape[0]
    full = lambda shape: pl.BlockSpec(shape, lambda: (0,) * len(shape))
    out = pl.pallas_call(
        mlp_kernel,
        out_shape=jax.ShapeDtypeStruct((n, HP), jnp.float32),
        grid=(),
        in_specs=[
            full(x.shape),
            full(w1_p.shape),
            full(gamma_p.shape),
            full(beta_p.shape),
            full(w23_p.shape),
        ],
        out_specs=full((n, HP)),
    )(x, w1_p, gamma_p, beta_p, w23_p)
    return out[:, :1]


def init_params(key, input_dim, hidden_dim, output_dim):
    """Deterministic init mimicking nn.Linear's U(-1/sqrt(fan_in), 1/sqrt(fan_in))."""
    k1, k2, k3 = jax.random.split(key, 3)

    def lin(k, fan_in, fan_out):
        bound = 1.0 / jnp.sqrt(jnp.float32(fan_in))
        # stored as [in, out] (transposed vs. PyTorch's [out, in])
        return jax.random.uniform(k, (fan_in, fan_out), jnp.float32, -bound, bound)

    w1 = lin(k1, input_dim, hidden_dim)
    w2 = lin(k2, hidden_dim, hidden_dim)
    w3 = lin(k3, hidden_dim, output_dim)
    gamma = jnp.ones((1, hidden_dim), jnp.float32)   # BatchNorm1d weight
    beta = jnp.zeros((1, hidden_dim), jnp.float32)   # BatchNorm1d bias
    return w1, gamma, beta, w2, w3


def reference_forward(x, w1, gamma, beta, w2, w3):
    h = x @ w1
    mean = jnp.mean(h, axis=0, keepdims=True)
    var = jnp.mean((h - mean) ** 2, axis=0, keepdims=True)
    h = (h - mean) / jnp.sqrt(var + EPS) * gamma + beta
    h = jnp.maximum(h, 0.0)
    h = h @ w2
    h = h @ w3
    return jax.nn.sigmoid(h)


if __name__ == "__main__":
    # Shapes consistent with the module defaults:
    # input_dim=16, hidden_dim=30, num_layers=3, output_dim=1, batch=8.
    batch, input_dim, hidden_dim, output_dim = 8, 16, 30, 1

    key = jax.random.PRNGKey(0)
    kx, kp = jax.random.split(key)
    x = jax.random.normal(kx, (batch, input_dim), jnp.float32)
    w1, gamma, beta, w2, w3 = init_params(kp, input_dim, hidden_dim, output_dim)

    # One-time folding / padding of parameters (would live at init in practice).
    w1_p, gamma_p, beta_p, w23_p = fold_params(w1, gamma, beta, w2, w3)

    out = mlp_forward(x, w1_p, gamma_p, beta_p, w23_p)
    out = jax.block_until_ready(out)

    ref = reference_forward(x, w1, gamma, beta, w2, w3)
    assert out.shape == (batch, 1), out.shape
    assert jnp.allclose(out, ref, atol=1e-5, rtol=1e-5), (out, ref)

    print("KERNEL_OK")
</pallas_src>

<mosaic_0001>
module attributes {stable_mosaic.version = 11 : i64} {
  func.func @mlp_kernel(%arg0: memref<8x16xf32, #tpu.memory_space<vmem>>, %arg1: memref<16x128xf32, #tpu.memory_space<vmem>>, %arg2: memref<1x128xf32, #tpu.memory_space<vmem>>, %arg3: memref<1x128xf32, #tpu.memory_space<vmem>>, %arg4: memref<1x128xf32, #tpu.memory_space<vmem>>, %arg5: memref<8x128xf32, #tpu.memory_space<vmem>>) attributes {dimension_semantics = [], scalar_prefetch = 0 : i64, scratch_operands = 0 : i64, tpu.core_type = #tpu.core_type<tc>} {
    %c0 = arith.constant 0 : index
    %c0_0 = arith.constant 0 : index
    %0 = vector.load %arg0[%c0, %c0_0] : memref<8x16xf32, #tpu.memory_space<vmem>>, vector<8x16xf32>
    %c0_1 = arith.constant 0 : index
    %c0_2 = arith.constant 0 : index
    %1 = vector.load %arg1[%c0_1, %c0_2] : memref<16x128xf32, #tpu.memory_space<vmem>>, vector<16x128xf32>
    %cst = arith.constant dense<0.000000e+00> : vector<8x128xf32>
    %2 = tpu.matmul %0, %1, %cst {dimension_numbers = #tpu.dot_dimension_numbers<[1], [0], [0], [1], [0, 0, 1, 1], [], []>} : vector<8x16xf32>, vector<16x128xf32>, vector<8x128xf32> -> vector<8x128xf32>
    %cst_3 = arith.constant dense<0.000000e+00> : vector<128xf32>
    %3 = vector.multi_reduction <add>, %2, %cst_3 [0] : vector<8x128xf32> to vector<128xf32>
    %4 = vector.shape_cast %3 : vector<128xf32> to vector<1x128xf32>
    %cst_4 = arith.constant 8.000000e+00 : f32
    %5 = vector.broadcast %cst_4 : f32 to vector<1x128xf32>
    %6 = arith.divf %4, %5 : vector<1x128xf32>
    %7 = vector.broadcast %6 : vector<1x128xf32> to vector<8x128xf32>
    %8 = arith.subf %2, %7 : vector<8x128xf32>
    %9 = arith.mulf %8, %8 : vector<8x128xf32>
    %cst_5 = arith.constant dense<0.000000e+00> : vector<128xf32>
    %10 = vector.multi_reduction <add>, %9, %cst_5 [0] : vector<8x128xf32> to vector<128xf32>
    %11 = vector.shape_cast %10 : vector<128xf32> to vector<1x128xf32>
    %cst_6 = arith.constant 8.000000e+00 : f32
    %12 = vector.broadcast %cst_6 : f32 to vector<1x128xf32>
    %13 = arith.divf %11, %12 : vector<1x128xf32>
    %c0_7 = arith.constant 0 : index
    %c0_8 = arith.constant 0 : index
    %14 = vector.load %arg2[%c0_7, %c0_8] : memref<1x128xf32, #tpu.memory_space<vmem>>, vector<1x128xf32>
    %cst_9 = arith.constant 9.99999974E-6 : f32
    %15 = vector.broadcast %cst_9 : f32 to vector<1x128xf32>
    %16 = arith.addf %13, %15 : vector<1x128xf32>
    %17 = math.rsqrt %16 : vector<1x128xf32>
    %18 = arith.mulf %14, %17 : vector<1x128xf32>
    %c0_10 = arith.constant 0 : index
    %c0_11 = arith.constant 0 : index
    %19 = vector.load %arg3[%c0_10, %c0_11] : memref<1x128xf32, #tpu.memory_space<vmem>>, vector<1x128xf32>
    %20 = arith.mulf %6, %18 : vector<1x128xf32>
    %21 = arith.subf %19, %20 : vector<1x128xf32>
    %22 = vector.broadcast %18 : vector<1x128xf32> to vector<8x128xf32>
    %23 = arith.mulf %2, %22 : vector<8x128xf32>
    %24 = vector.broadcast %21 : vector<1x128xf32> to vector<8x128xf32>
    %25 = arith.addf %23, %24 : vector<8x128xf32>
    %cst_12 = arith.constant 0.000000e+00 : f32
    %26 = vector.broadcast %cst_12 : f32 to vector<8x128xf32>
    %27 = arith.maximumf %25, %26 : vector<8x128xf32>
    %c0_13 = arith.constant 0 : index
    %c0_14 = arith.constant 0 : index
    %28 = vector.load %arg4[%c0_13, %c0_14] : memref<1x128xf32, #tpu.memory_space<vmem>>, vector<1x128xf32>
    %29 = vector.broadcast %28 : vector<1x128xf32> to vector<8x128xf32>
    %30 = arith.mulf %27, %29 : vector<8x128xf32>
    %cst_15 = arith.constant dense<0.000000e+00> : vector<8xf32>
    %31 = vector.multi_reduction <add>, %30, %cst_15 [1] : vector<8x128xf32> to vector<8xf32>
    %32 = vector.shape_cast %31 : vector<8xf32> to vector<8x1xf32>
    %cst_16 = arith.constant 0.000000e+00 : f32
    %33 = vector.broadcast %cst_16 : f32 to vector<8x1xf32>
    %34 = arith.subf %33, %32 : vector<8x1xf32>
    %35 = math.exp %34 : vector<8x1xf32>
    %cst_17 = arith.constant 1.000000e+00 : f32
    %36 = vector.broadcast %cst_17 : f32 to vector<8x1xf32>
    %37 = arith.addf %36, %35 : vector<8x1xf32>
    %cst_18 = arith.constant 1.000000e+00 : f32
    %38 = vector.broadcast %cst_18 : f32 to vector<8x1xf32>
    %39 = arith.divf %38, %37 : vector<8x1xf32>
    %40 = vector.shape_cast %39 : vector<8x1xf32> to vector<8x1xf32>
    %41 = vector.broadcast %40 : vector<8x1xf32> to vector<8x128xf32>
    %c0_19 = arith.constant 0 : index
    %c0_20 = arith.constant 0 : index
    %42 = vector.load %arg5[%c0_19, %c0_20] : memref<8x128xf32, #tpu.memory_space<vmem>>, vector<8x128xf32>
    tpu.vector_store %arg5[%c0_19, %c0_20], %41 {strides = array<i32>} : memref<8x128xf32, #tpu.memory_space<vmem>>, vector<8x128xf32>,
    return
  }
}

</mosaic_0001>

<llo_original>
// kernel: tpu_custom_call.1
$region0: #{tpu_custom_call.1}
  #allocation0 [shape = 'u32[]', space=smem, size = 0x4, offset = 0x4, fixed_abs, tag = 'smem constant byte address 0x4 - core index']
  #allocation1 [shape = 'u32[144,128]{1,0:T(1,128)}', space=vmem, size = 0x12000, scoped, tag = 'internal scratch']
  %s0 = inlined_call_operand.hbm [shape: f32[8,16], index: 0, kind: input, shape index: {}]
  %s1 = inlined_call_operand.hbm [shape: f32[16,128], index: 1, kind: input, shape index: {}]
  %s2 = inlined_call_operand.vmem [shape: f32[1,128], index: 2, kind: input, shape index: {}]
  %s3 = inlined_call_operand.vmem [shape: f32[1,128], index: 3, kind: input, shape index: {}]
  %s4 = inlined_call_operand.vmem [shape: f32[1,128], index: 4, kind: input, shape index: {}]
  %s5 = inlined_call_operand.hbm [shape: f32[8,128], index: 5, kind: output, shape index: {}]
  %s6 = sld [smem:[#allocation0]]
  $region38: #{tpu_custom_call.1} parent=0
    _
  %s8 = ssub.s32 1, %s6
  %s9 = scalar_select 0, %s8, %s6
  $region1: #{tpu_custom_call.1} parent=0
    #allocation2 [shape = 'u8[4096]{0}', space=vmem, size = 0x1000, scoped, tag = 'input window, operand 0, single buffered']
    #allocation3 [shape = 's32[1]{0}', space=sflag, size = 0x4, scoped, tag = 'scoped memory for tpu_custom_call.1']
    #allocation4 [shape = 's32[1]{0}', space=sflag, size = 0x4, scoped, tag = 'scoped memory for tpu_custom_call.1']
    #allocation5 [shape = 'u8[8192]{0}', space=vmem, size = 0x2000, scoped, tag = 'input window, operand 1, single buffered']
    #allocation6 [shape = 's32[1]{0}', space=sflag, size = 0x4, scoped, tag = 'scoped memory for tpu_custom_call.1']
    #allocation7 [shape = 'u8[4096]{0}', space=vmem, size = 0x1000, scoped, tag = 'output window, operand 0, single buffered']
    %10 = vsyncpa [#allocation3], 0
    %11 = vsyncpa [#allocation6], 0
    %12 = vsyncpa [#allocation4], 0
    // Predicated region
    $region2: #{tpu_custom_call.1} parent=1 // pred_check
      _
    $region3: #{tpu_custom_call.1} parent=1 // pred_check_branch
      %14 = sbr.rel (0) target = $region5
    $region4: #{tpu_custom_call.1} parent=1 // pred_region
      %s16 = ssub.s32 128, 128
      %17 = vsyncadd [#allocation3], %s16
      %s19 = sshll.u32 [#allocation2], 4
      %s20 = int_to_ptr.vmem [resolvable:$true] %s19
      %22 = dma.hbm_to_vmem [thread:$0]  %s0, 128, %s20, [#allocation3]
    $region5: #{tpu_custom_call.1} parent=1 // pred_fallthru
      _
    // Predicated region
    $region6: #{tpu_custom_call.1} parent=1 // pred_check
      _
    $region7: #{tpu_custom_call.1} parent=1 // pred_check_branch
      %24 = sbr.rel (0) target = $region9
    $region8: #{tpu_custom_call.1} parent=1 // pred_region
      %s26 = ssub.s32 256, 256
      %27 = vsyncadd [#allocation6], %s26
      %s28 = sshll.u32 [#allocation5], 4
      %s29 = int_to_ptr.vmem [resolvable:$true] %s28
      %34 = dma.hbm_to_vmem [thread:$0]  %s1, 256, %s29, [#allocation6], 128, 128, 8
    $region9: #{tpu_custom_call.1} parent=1 // pred_fallthru
      _
    // Predicated region
    $region10: #{tpu_custom_call.1} parent=1 // pred_check
      _
    $region11: #{tpu_custom_call.1} parent=1 // pred_check_branch
      %36 = sbr.rel (0) target = $region13
    $region12: #{tpu_custom_call.1} parent=1 // pred_region
      _
    $region13: #{tpu_custom_call.1} parent=1 // pred_fallthru
      _
    // Predicated region
    $region14: #{tpu_custom_call.1} parent=1 // pred_check
      _
    $region15: #{tpu_custom_call.1} parent=1 // pred_check_branch
      %38 = sbr.rel (0) target = $region17
    $region16: #{tpu_custom_call.1} parent=1 // pred_region
      _
    $region17: #{tpu_custom_call.1} parent=1 // pred_fallthru
      _
    // Predicated region
    $region18: #{tpu_custom_call.1} parent=1 // pred_check
      _
    $region19: #{tpu_custom_call.1} parent=1 // pred_check_branch
      %40 = sbr.rel (0) target = $region21
    $region20: #{tpu_custom_call.1} parent=1 // pred_region
      _
    $region21: #{tpu_custom_call.1} parent=1 // pred_fallthru
      _
    // Predicated region
    $region22: #{tpu_custom_call.1} parent=1 // pred_check
      _
    $region23: #{tpu_custom_call.1} parent=1 // pred_check_branch
      %42 = sbr.rel (0) target = $region25
    $region24: #{tpu_custom_call.1} parent=1 // pred_region
      %43 = dma.done [#allocation3], 128
    $region25: #{tpu_custom_call.1} parent=1 // pred_fallthru
      _
    // Predicated region
    $region26: #{tpu_custom_call.1} parent=1 // pred_check
      _
    $region27: #{tpu_custom_call.1} parent=1 // pred_check_branch
      %45 = sbr.rel (0) target = $region29
    $region28: #{tpu_custom_call.1} parent=1 // pred_region
      %46 = dma.done [#allocation6], 256
    $region29: #{tpu_custom_call.1} parent=1 // pred_fallthru
      _
    %v47 = vld [vmem:[#allocation2] sm:$0xff]
    %v48 = vld [vmem:[#allocation5] sm:$0xff]
    %v49 = vld [vmem:[#allocation5 + $0x8] sm:$0xff]
    %vm50 = vcmask 130048
    %v52 = vsel %vm50, %v47, 0
    %54 = vmatprep.subr.mxu0 0.0
    %55 = vmatpush1.msra.mxu0 %v48
    %56 = vmatprep.subr.mxu0 0.0
    %57 = vmatpush1.msra.mxu0 %v49
    %58 = vmatprep.subr.mxu0 0.0
    %59 = vmatpush1.msra.mxu0 0.0
    %60 = vmatprep.subr.mxu0 0.0
    %61 = vmatpush1.msra.mxu0 0.0
    %62 = vmatprep.subr.mxu0 0.0
    %63 = vmatpush1.msra.mxu0 0.0
    %64 = vmatprep.subr.mxu0 0.0
    %65 = vmatpush1.msra.mxu0 0.0
    %66 = vmatprep.subr.mxu0 0.0
    %67 = vmatpush1.msra.mxu0 0.0
    %68 = vmatprep.subr.mxu0 0.0
    %69 = vmatpush1.msra.mxu0 0.0
    %70 = vmatprep.subr.mxu0 0.0
    %71 = vmatpush1.msra.mxu0 0.0
    %72 = vmatprep.subr.mxu0 0.0
    %73 = vmatpush1.msra.mxu0 0.0
    %74 = vmatprep.subr.mxu0 0.0
    %75 = vmatpush1.msra.mxu0 0.0
    %76 = vmatprep.subr.mxu0 0.0
    %77 = vmatpush1.msra.mxu0 0.0
    %78 = vmatprep.subr.mxu0 0.0
    %79 = vmatpush1.msra.mxu0 0.0
    %80 = vmatprep.subr.mxu0 0.0
    %81 = vmatpush1.msra.mxu0 0.0
    %82 = vmatprep.subr.mxu0 0.0
    %83 = vmatpush1.msra.mxu0 0.0
    %84 = vmatprep.subr.mxu0 0.0
    %85 = vmatpush1.msra.mxu0 0.0
    %86 = vmatprep.subr.mxu0 0.0
    %87 = vmatpush1.msra.mxu0 0.0
    %88 = vmatprep.subr.mxu0 0.0
    %89 = vmatpush1.msra.mxu0 0.0
    %90 = vmatprep.subr.mxu0 0.0
    %91 = vmatpush1.msra.mxu0 0.0
    %92 = vmatprep.subr.mxu0 0.0
    %93 = vmatpush1.msra.mxu0 0.0
    %94 = vmatprep.subr.mxu0 0.0
    %95 = vmatpush1.msra.mxu0 0.0
    %96 = vmatprep.subr.mxu0 0.0
    %97 = vmatpush1.msra.mxu0 0.0
    %98 = vmatprep.subr.mxu0 0.0
    %99 = vmatpush1.msra.mxu0 0.0
    %100 = vmatprep.subr.mxu0 0.0
    %101 = vmatpush1.msra.mxu0 0.0
    %102 = vmatprep.subr.mxu0 0.0
    %103 = vmatpush1.msra.mxu0 0.0
    %104 = vmatprep.subr.mxu0 0.0
    %105 = vmatpush1.msra.mxu0 0.0
    %106 = vmatprep.subr.mxu0 0.0
    %107 = vmatpush1.msra.mxu0 0.0
    %108 = vmatprep.subr.mxu0 0.0
    %109 = vmatpush1.msra.mxu0 0.0
    %110 = vmatprep.subr.mxu0 0.0
    %111 = vmatpush1.msra.mxu0 0.0
    %112 = vmatprep.subr.mxu0 0.0
    %113 = vmatpush1.msra.mxu0 0.0
    %114 = vmatprep.subr.mxu0 0.0
    %115 = vmatpush1.msra.mxu0 0.0
    %116 = vmatprep.subr.mxu0 0.0
    %117 = vmatpush1.msra.mxu0 0.0
    %118 = vmatprep.mubr.f32.mxu0 0.0
    %119 = vmatmul.mubr.f32.gmra.mrb[0].mxu0 %v52
    %v120 = vpop.f32.mrb[0].mxu0
    %v121 = vadd.f32 0.0, %v120
    %v122 = vpop.f32.mrb[0].mxu0
    %123 = vdwg.mxu0
    %v124 = vrot.slane %v121, 4
    %v125 = vadd.f32 %v121, %v124
    %v126 = vrot.slane %v125, 2
    %v127 = vadd.f32 %v125, %v126
    %v128 = vrot.slane %v127, 1
    %v129 = vadd.f32 %v127, %v128
    %v130 = vrcp.pop 8.0
    %v131 = vmul.f32 %v129, %v130
    %v132 = vsub.f32 %v121, %v131
    %v133 = vmul.f32 %v132, %v132
    %v134 = vrot.slane %v133, 4
    %v135 = vadd.f32 %v133, %v134
    %v136 = vrot.slane %v135, 2
    %v137 = vadd.f32 %v135, %v136
    %v138 = vrot.slane %v137, 1
    %v139 = vadd.f32 %v137, %v138
    %v140 = vmul.f32 %v139, %v130
    %v141 = vld [vmem:[%s2] sm:$0x1]
    %v142 = vadd.f32 %v140, 1e-05
    %v143 = vrsqrt.pop %v142
    %v144 = vmul.f32 %v141, %v143
    %v145 = vld [vmem:[%s3] sm:$0x1]
    %v146 = vmul.f32 %v131, %v144
    %v147 = vsub.f32 %v145, %v146
    %v149 = vlaneseq
    %v150 = vshrl.u32 %v149, 7
    %v151 = vsub.s32 0, %v150
    %v152 = vrot.slane %v144, %v151
    %v154 = vmul.f32 %v121, %v152
    %v156 = vlaneseq
    %v157 = vshrl.u32 %v156, 7
    %v158 = vsub.s32 0, %v157
    %v159 = vrot.slane %v147, %v158
    %v161 = vadd.f32 %v154, %v159
    %v162 = vmax.f32 %v161, 0.0
    %v163 = vld [vmem:[%s4] sm:$0x1]
    %v165 = vlaneseq
    %v166 = vshrl.u32 %v165, 7
    %v167 = vsub.s32 0, %v166
    %v168 = vrot.slane %v163, %v167
    %v170 = vmul.f32 %v162, %v168
    %171 = vadd.xlane.f32.xlu0 %v170
    %v172 = vpop.xlane.xlu0 %171
    %v173 = vsub.f32 0.0, %v172
    %v174 = vmul.f32 %v173, 1.442695
    %v175 = vpow.pop %v174
    %v176 = vadd.f32 %v175, 1.0
    %v177 = vrcp.pop %v176
    %v178 = vmul.f32 1.0, %v177
    %179 = vst [vmem:[#allocation7] sm:$0xff] %v178
    // Predicated region
    $region30: #{tpu_custom_call.1} parent=1 // pred_check
      _
    $region31: #{tpu_custom_call.1} parent=1 // pred_check_branch
      %181 = sbr.rel (0) target = $region33
    $region32: #{tpu_custom_call.1} parent=1 // pred_region
      %s183 = ssub.s32 128, 128
      %184 = vsyncadd [#allocation4], %s183
      %s186 = sshll.u32 [#allocation7], 4
      %s187 = int_to_ptr.vmem [resolvable:$true] %s186
      %189 = dma.vmem_to_hbm [thread:$0]  %s187, 128, %s5, [#allocation4]
    $region33: #{tpu_custom_call.1} parent=1 // pred_fallthru
      _
    // Predicated region
    $region34: #{tpu_custom_call.1} parent=1 // pred_check
      _
    $region35: #{tpu_custom_call.1} parent=1 // pred_check_branch
      %191 = sbr.rel (0) target = $region37
    $region36: #{tpu_custom_call.1} parent=1 // pred_region
      %192 = dma.done [#allocation4], 128
    $region37: #{tpu_custom_call.1} parent=1 // pred_fallthru
      _
    %193 = vsyncpa [#allocation3], 1
    %194 = vsyncpa [#allocation6], 1
    %195 = vsyncpa [#allocation4], 1

</llo_original>
